<compile_context>
chip_gen: v5e
topology: v5e:2x2
jax: 0.10.0
libtpu: 0.0.40
codegen_flags: <defaults>
</compile_context>

<pallas_src>
import numpy as np
import jax
import jax.numpy as jnp
from jax.experimental import pallas as pl
from jax.experimental.pallas import tpu as pltpu

LANE = 128   # lane width: every feature dim is zero-padded to this
SUB = 8      # f32 sublane granularity for batch / bias-row padding


def _round_up(x, n):
    return ((x + n - 1) // n) * n


# -----------------------------------------------------------------------------
# Kernel builder: the whole conditional-MLP forward runs inside one kernel.
# head_depth / depth / tanh placement / in_sz are static (baked at trace time),
# so the layer loop is a static Python unroll.
# -----------------------------------------------------------------------------
def make_cond_layer_kernel(head_depth, depth, head_tanh, main_tanh,
                           in_sz, n_w_blocks):
    """refs = (x, slab, out)

      x    : [bt, LANE]  param in lanes [0,in_sz), cond in lanes
                         [in_sz, in_sz+cond_sz), rest zero
      slab : [n_w_blocks*LANE + pad8(head_depth+depth), LANE]
             128x128 zero-padded weight blocks stacked row-wise
             (head_0..head_{hd-1}, main_0..main_{depth-1}); the first head
             block is row-shifted by in_sz, the last head block is
             column-shifted by in_sz; bias rows appended at the tail.
      out  : [bt, LANE]  out_sz valid lanes
    """
    bias_base = n_w_blocks * LANE

    def kernel(x_ref, w_ref, out_ref):
        def w_block(i):            # static, 128-row-aligned slice of the slab
            return w_ref[i * LANE:(i + 1) * LANE, :]

        def b_row(i):              # static single-row slice; broadcasts over batch
            return w_ref[bias_base + i:bias_base + i + 1, :]

        x = x_ref[...]
        wi = 0
        bi = 0

        # --- head_layers(cond) ------------------------------------------------
        if head_depth > 0:
            h = x  # first head block has zero rows on the param lanes
            for li in range(head_depth):
                h = jnp.dot(h, w_block(wi),
                            preferred_element_type=jnp.float32) + b_row(bi)
                wi += 1
                bi += 1
                if head_tanh[li]:
                    h = jnp.tanh(h)
            # In-register concat([param, head_out]): the last head block already
            # placed its output in lanes [in_sz, in_sz+head_sz); mask the cond
            # lanes out of x and add.  VPU-only, no extra serial MXU matmul.
            lane = jax.lax.broadcasted_iota(jnp.int32, x.shape, 1)
            y = jnp.where(lane < in_sz, x, 0.0) + h
        else:
            # concat([param, cond]) is exactly the lane-packed input
            y = x

        # --- layers(concat) ----------------------------------------------------
        for li in range(depth):
            y = jnp.dot(y, w_block(wi),
                        preferred_element_type=jnp.float32) + b_row(bi)
            wi += 1
            bi += 1
            if main_tanh[li]:
                y = jnp.tanh(y)

        out_ref[...] = y.astype(out_ref.dtype)

    return kernel


# -----------------------------------------------------------------------------
# Parameter init (deterministic, mirrors nn.Linear's U(-1/sqrt(fan_in), ...)).
# Weights are stored already transposed: shape [in, out].  Biases as [1, out].
# -----------------------------------------------------------------------------
def init_linear(key, in_dim, out_dim):
    kw, kb = jax.random.split(key)
    bound = 1.0 / np.sqrt(in_dim)
    w = jax.random.uniform(kw, (in_dim, out_dim), jnp.float32, -bound, bound)
    b = jax.random.uniform(kb, (1, out_dim), jnp.float32, -bound, bound)
    return w, b


def build_params(key, in_sz, out_sz, config):
    head_depth = config['head_depth']
    depth = config['depth']
    cond_sz = config['cond_sz']
    head_sz = config['head_sz']
    feat_sz = config['feat_sz']

    keys = jax.random.split(key, head_depth + depth)
    head_params, head_tanh = [], []
    for i in range(head_depth):
        l_in = cond_sz
        l_out = head_sz if i == head_depth - 1 else cond_sz
        head_params.append(init_linear(keys[i], l_in, l_out))
        # NB: the PyTorch module gates the head Tanh on config['depth'] (sic) —
        # replicated deliberately, do not "fix".
        head_tanh.append(i < depth - 1)

    first_in_sz = in_sz + (head_sz if head_depth > 0 else cond_sz)
    main_params, main_tanh = [], []
    for i in range(depth):
        l_in = first_in_sz if i == 0 else feat_sz
        l_out = out_sz if i == depth - 1 else feat_sz
        main_params.append(init_linear(keys[head_depth + i], l_in, l_out))
        main_tanh.append(i < depth - 1)

    return head_params, head_tanh, main_params, main_tanh


# -----------------------------------------------------------------------------
# Parameter packing: one slab holding every weight block + every bias row.
#   - first head block: rows shifted by in_sz (reads cond lanes of packed x)
#   - last  head block: cols shifted by in_sz (writes into the concat position)
#   - zero padding is exact: padded input lanes hit zero rows, padded output
#     lanes get zero cols + zero bias (and tanh(0)==0), so downstream layers
#     see exactly the unpadded math.
# -----------------------------------------------------------------------------
def pack_params(in_sz, head_params, main_params):
    head_depth = len(head_params)

    def place(w, b, row_off, col_off):
        r, c = w.shape
        if row_off + r > LANE or col_off + c > LANE:
            raise ValueError("weight block does not fit a 128x128 MXU tile; "
                             "feature dims > 128 need a K/N tiling loop")
        wb = jnp.zeros((LANE, LANE), jnp.float32)
        wb = wb.at[row_off:row_off + r, col_off:col_off + c].set(w)
        br = jnp.zeros((1, LANE), jnp.float32)
        br = br.at[0, col_off:col_off + c].set(b[0])
        return wb, br

    w_blocks, b_rows = [], []
    for i, (w, b) in enumerate(head_params):
        row_off = in_sz if i == 0 else 0
        col_off = in_sz if i == head_depth - 1 else 0
        wb, br = place(w, b, row_off, col_off)
        w_blocks.append(wb)
        b_rows.append(br)
    for (w, b) in main_params:
        wb, br = place(w, b, 0, 0)
        w_blocks.append(wb)
        b_rows.append(br)

    n_bias = len(b_rows)
    pad_rows = _round_up(n_bias, SUB) - n_bias
    pieces = w_blocks + b_rows
    if pad_rows:
        pieces.append(jnp.zeros((pad_rows, LANE), jnp.float32))
    slab = jnp.concatenate(pieces, axis=0)
    return slab, len(w_blocks)


# -----------------------------------------------------------------------------
# Wrapper: one lane-packed input, one resident parameter slab, batch-tiled
# "parallel" grid, lane-dense (unmasked) output store.
# -----------------------------------------------------------------------------
def conditional_layer_forward(param, cond, in_sz, out_sz, config,
                              head_params, head_tanh, main_params, main_tanh,
                              batch_tile=1024):
    head_depth = config['head_depth']
    depth = config['depth']
    cond_sz = config['cond_sz']
    head_sz = config['head_sz']
    feat_sz = config['feat_sz']

    # Explicit guards (perf-review correctness concern): the single-tile path
    # only works when everything fits one 128-lane tile.
    if in_sz + cond_sz > LANE:
        raise ValueError("in_sz + cond_sz must be <= 128 for the lane-packed input")
    if head_depth > 0 and in_sz + head_sz > LANE:
        raise ValueError("in_sz + head_sz must be <= 128 for the shifted concat")
    if max(cond_sz, head_sz, feat_sz, out_sz) > LANE:
        raise ValueError("feature dims > 128 need a K/N tiling loop")

    B = param.shape[0]
    # Large batch tile (overhead amortization); single grid step for small B,
    # multiple "parallel" steps for big B (v7x megacore gets both TCs busy).
    bt = min(batch_tile, _round_up(B, SUB))
    Bp = _round_up(B, bt)

    # One fused pad: param + cond lane-packed into a single [Bp, 128] slab.
    x = jnp.concatenate([param, cond], axis=-1)
    x_p = jnp.pad(x, ((0, Bp - B), (0, LANE - x.shape[1])))

    slab, n_w_blocks = pack_params(in_sz, head_params, main_params)

    kernel = make_cond_layer_kernel(head_depth, depth, head_tanh, main_tanh,
                                    in_sz, n_w_blocks)

    n_matmul = head_depth + depth
    n_tanh = int(sum(head_tanh) + sum(main_tanh))
    cost = pl.CostEstimate(
        flops=2 * Bp * LANE * LANE * n_matmul,
        transcendentals=Bp * LANE * n_tanh,
        bytes_accessed=int(slab.size * 4 + 2 * Bp * LANE * 4),
    )

    out_p = pl.pallas_call(
        kernel,
        out_shape=jax.ShapeDtypeStruct((Bp, LANE), param.dtype),
        grid_spec=pl.GridSpec(
            grid=(Bp // bt,),
            in_specs=[
                pl.BlockSpec((bt, LANE), lambda i: (i, 0)),     # packed activations
                pl.BlockSpec(slab.shape, lambda i: (0, 0)),     # params: resident
                # NOTE: pipeline_mode=pl.Buffered(1) on the slab spec would drop
                # its redundant second buffer; left at default for portability.
            ],
            out_specs=pl.BlockSpec((bt, LANE), lambda i: (i, 0)),
        ),
        compiler_params=pltpu.CompilerParams(
            dimension_semantics=("parallel",)),                 # megacore on v7x
        cost_estimate=cost,
    )(x_p, slab)

    # Slice back to the logical shape (kept for the correctness check; callers
    # that tolerate the padded [B,128] layout can skip this extra HBM pass).
    return out_p[:B, :out_sz]


# -----------------------------------------------------------------------------
# Pure-JAX reference (mirrors the PyTorch forward exactly, incl. the concat).
# -----------------------------------------------------------------------------
def reference_forward(param, cond, head_params, head_tanh, main_params,
                      main_tanh):
    h = cond
    for (w, b), t in zip(head_params, head_tanh):
        h = h @ w + b
        if t:
            h = jnp.tanh(h)
    x = jnp.concatenate([param, h], axis=-1)
    for (w, b), t in zip(main_params, main_tanh):
        x = x @ w + b
        if t:
            x = jnp.tanh(x)
    return x


if __name__ == "__main__":
    config = {
        'head_depth': 2,
        'depth': 2,
        'cond_sz': 32,
        'head_sz': 32,
        'feat_sz': 64,
    }
    in_sz, out_sz = 16, 16
    B = 300   # non-multiple of 8 on purpose: exercises batch padding + slice-back

    key = jax.random.PRNGKey(0)
    k_param, k_cond, k_w = jax.random.split(key, 3)
    param = jax.random.normal(k_param, (B, in_sz), jnp.float32)
    cond = jax.random.normal(k_cond, (B, config['cond_sz']), jnp.float32)

    head_params, head_tanh, main_params, main_tanh = build_params(
        k_w, in_sz, out_sz, config)

    out = conditional_layer_forward(param, cond, in_sz, out_sz, config,
                                    head_params, head_tanh, main_params,
                                    main_tanh)
    out = jax.block_until_ready(out)

    ref = reference_forward(param, cond, head_params, head_tanh, main_params,
                            main_tanh)
    np.testing.assert_allclose(np.asarray(out), np.asarray(ref),
                               rtol=1e-5, atol=1e-5)
    print("KERNEL_OK")
</pallas_src>

<mosaic_0001>
module attributes {stable_mosaic.version = 11 : i64} {
  func.func @kernel(%arg0: i32, %arg1: memref<304x128xf32, #tpu.memory_space<vmem>>, %arg2: memref<520x128xf32, #tpu.memory_space<vmem>>, %arg3: memref<304x128xf32, #tpu.memory_space<vmem>>) attributes {dimension_semantics = [#tpu.dimension_semantics<parallel>], iteration_bounds = array<i64: 1>, scalar_prefetch = 0 : i64, scratch_operands = 0 : i64, tpu.core_type = #tpu.core_type<tc>, window_params = [{transform_indices = @transform_0, window_bounds = array<i64: 304, 128>}, {pipeline_mode = #tpu.pipeline_mode<synchronous>, transform_indices = @transform_1, window_bounds = array<i64: 520, 128>}, {transform_indices = @transform_2, window_bounds = array<i64: 304, 128>}]} {
    %c0 = arith.constant 0 : index
    %c0_0 = arith.constant 0 : index
    %0 = vector.load %arg1[%c0, %c0_0] : memref<304x128xf32, #tpu.memory_space<vmem>>, vector<304x128xf32>
    %c0_1 = arith.constant 0 : index
    %c0_2 = arith.constant 0 : index
    %1 = vector.load %arg2[%c0_1, %c0_2] : memref<520x128xf32, #tpu.memory_space<vmem>>, vector<128x128xf32>
    %cst = arith.constant dense<0.000000e+00> : vector<304x128xf32>
    %2 = tpu.matmul %0, %1, %cst {dimension_numbers = #tpu.dot_dimension_numbers<[1], [0], [0], [1], [0, 0, 1, 1], [], []>} : vector<304x128xf32>, vector<128x128xf32>, vector<304x128xf32> -> vector<304x128xf32>
    %c512 = arith.constant 512 : index
    %c0_3 = arith.constant 0 : index
    %3 = vector.load %arg2[%c512, %c0_3] : memref<520x128xf32, #tpu.memory_space<vmem>>, vector<1x128xf32>
    %4 = vector.broadcast %3 : vector<1x128xf32> to vector<304x128xf32>
    %5 = arith.addf %2, %4 : vector<304x128xf32>
    %6 = math.tanh %5 : vector<304x128xf32>
    %c128 = arith.constant 128 : index
    %c0_4 = arith.constant 0 : index
    %7 = vector.load %arg2[%c128, %c0_4] : memref<520x128xf32, #tpu.memory_space<vmem>>, vector<128x128xf32>
    %cst_5 = arith.constant dense<0.000000e+00> : vector<304x128xf32>
    %8 = tpu.matmul %6, %7, %cst_5 {dimension_numbers = #tpu.dot_dimension_numbers<[1], [0], [0], [1], [0, 0, 1, 1], [], []>} : vector<304x128xf32>, vector<128x128xf32>, vector<304x128xf32> -> vector<304x128xf32>
    %c513 = arith.constant 513 : index
    %c0_6 = arith.constant 0 : index
    %9 = vector.load %arg2[%c513, %c0_6] : memref<520x128xf32, #tpu.memory_space<vmem>>, vector<1x128xf32>
    %10 = vector.broadcast %9 : vector<1x128xf32> to vector<304x128xf32>
    %11 = arith.addf %8, %10 : vector<304x128xf32>
    %12 = tpu.iota {dimensions = array<i32: 1>} : vector<304x128xi32>
    %c16_i32 = arith.constant 16 : i32
    %13 = vector.broadcast %c16_i32 : i32 to vector<304x128xi32>
    %14 = arith.cmpi slt, %12, %13 : vector<304x128xi32>
    %cst_7 = arith.constant 0.000000e+00 : f32
    %15 = vector.broadcast %cst_7 : f32 to vector<304x128xf32>
    %16 = arith.select %14, %0, %15 : vector<304x128xi1>, vector<304x128xf32>
    %17 = arith.addf %16, %11 : vector<304x128xf32>
    %c256 = arith.constant 256 : index
    %c0_8 = arith.constant 0 : index
    %18 = vector.load %arg2[%c256, %c0_8] : memref<520x128xf32, #tpu.memory_space<vmem>>, vector<128x128xf32>
    %cst_9 = arith.constant dense<0.000000e+00> : vector<304x128xf32>
    %19 = tpu.matmul %17, %18, %cst_9 {dimension_numbers = #tpu.dot_dimension_numbers<[1], [0], [0], [1], [0, 0, 1, 1], [], []>} : vector<304x128xf32>, vector<128x128xf32>, vector<304x128xf32> -> vector<304x128xf32>
    %c514 = arith.constant 514 : index
    %c0_10 = arith.constant 0 : index
    %20 = vector.load %arg2[%c514, %c0_10] : memref<520x128xf32, #tpu.memory_space<vmem>>, vector<1x128xf32>
    %21 = vector.broadcast %20 : vector<1x128xf32> to vector<304x128xf32>
    %22 = arith.addf %19, %21 : vector<304x128xf32>
    %23 = math.tanh %22 : vector<304x128xf32>
    %c384 = arith.constant 384 : index
    %c0_11 = arith.constant 0 : index
    %24 = vector.load %arg2[%c384, %c0_11] : memref<520x128xf32, #tpu.memory_space<vmem>>, vector<128x128xf32>
    %cst_12 = arith.constant dense<0.000000e+00> : vector<304x128xf32>
    %25 = tpu.matmul %23, %24, %cst_12 {dimension_numbers = #tpu.dot_dimension_numbers<[1], [0], [0], [1], [0, 0, 1, 1], [], []>} : vector<304x128xf32>, vector<128x128xf32>, vector<304x128xf32> -> vector<304x128xf32>
    %c515 = arith.constant 515 : index
    %c0_13 = arith.constant 0 : index
    %26 = vector.load %arg2[%c515, %c0_13] : memref<520x128xf32, #tpu.memory_space<vmem>>, vector<1x128xf32>
    %27 = vector.broadcast %26 : vector<1x128xf32> to vector<304x128xf32>
    %28 = arith.addf %25, %27 : vector<304x128xf32>
    %c0_14 = arith.constant 0 : index
    %c0_15 = arith.constant 0 : index
    %29 = vector.load %arg3[%c0_14, %c0_15] : memref<304x128xf32, #tpu.memory_space<vmem>>, vector<304x128xf32>
    tpu.vector_store %arg3[%c0_14, %c0_15], %28 {strides = array<i32>} : memref<304x128xf32, #tpu.memory_space<vmem>>, vector<304x128xf32>,
    return
  }
  func.func @transform_0(%arg0: i32) -> (i32, i32) {
    %c0_i32 = arith.constant 0 : i32
    %c0_i32_0 = arith.constant 0 : i32
    return %arg0, %c0_i32 : i32, i32
  }
  func.func @transform_1(%arg0: i32) -> (i32, i32) {
    %c0_i32 = arith.constant 0 : i32
    %c0_i32_0 = arith.constant 0 : i32
    %c0_i32_1 = arith.constant 0 : i32
    return %c0_i32, %c0_i32_0 : i32, i32
  }
  func.func @transform_2(%arg0: i32) -> (i32, i32) {
    %c0_i32 = arith.constant 0 : i32
    %c0_i32_0 = arith.constant 0 : i32
    return %arg0, %c0_i32 : i32, i32
  }
}

</mosaic_0001>

<llo_original>
// kernel: tpu_custom_call.1
$region0: #{tpu_custom_call.1}
  #allocation0 [shape = 'u32[]', space=smem, size = 0x4, offset = 0x4, fixed_abs, tag = 'smem constant byte address 0x4 - core index']
  #allocation1 [shape = 'u32[72,128]{1,0:T(1,128)}', space=vmem, size = 0x9000, scoped, tag = 'internal scratch']
  %s0 = inlined_call_operand.hbm [shape: f32[304,128], index: 0, kind: input, shape index: {}]
  %s1 = inlined_call_operand.hbm [shape: f32[520,128], index: 1, kind: input, shape index: {}]
  %s2 = inlined_call_operand.hbm [shape: f32[304,128], index: 2, kind: output, shape index: {}]
  %s3 = sld [smem:[#allocation0]]
  $region26: #{tpu_custom_call.1} parent=0
    _
  %s5 = ssub.s32 1, %s3
  %s6 = scalar_select 0, %s5, %s3
  $region1: #{tpu_custom_call.1} parent=0
    #allocation2 [shape = 'u8[155648]{0}', space=vmem, size = 0x26000, scoped, tag = 'input window, operand 0, single buffered']
    #allocation3 [shape = 's32[1]{0}', space=sflag, size = 0x4, scoped, tag = 'scoped memory for tpu_custom_call.1']
    #allocation4 [shape = 's32[1]{0}', space=sflag, size = 0x4, scoped, tag = 'scoped memory for tpu_custom_call.1']
    #allocation5 [shape = 'u8[266240]{0}', space=vmem, size = 0x41000, scoped, tag = 'input window, operand 1, single buffered']
    #allocation6 [shape = 's32[1]{0}', space=sflag, size = 0x4, scoped, tag = 'scoped memory for tpu_custom_call.1']
    #allocation7 [shape = 'u8[155648]{0}', space=vmem, size = 0x26000, scoped, tag = 'output window, operand 0, single buffered']
    %7 = vsyncpa [#allocation3], 0
    %8 = vsyncpa [#allocation6], 0
    %9 = vsyncpa [#allocation4], 0
    // Predicated region
    $region2: #{tpu_custom_call.1} parent=1 // pred_check
      _
    $region3: #{tpu_custom_call.1} parent=1 // pred_check_branch
      %11 = sbr.rel (0) target = $region5
    $region4: #{tpu_custom_call.1} parent=1 // pred_region
      %13 = vsyncadd [#allocation3], 0
      %s14 = sshll.u32 %s0, 4
      %s15 = int_to_ptr.hbm [resolvable:$true] %s14
      %s16 = sshll.u32 [#allocation2], 4
      %s17 = int_to_ptr.vmem [resolvable:$true] %s16
      %22 = dma.hbm_to_vmem [thread:$0]  %s15, 4864, %s17, [#allocation3], 128, 128, 8
    $region5: #{tpu_custom_call.1} parent=1 // pred_fallthru
      _
    // Predicated region
    $region6: #{tpu_custom_call.1} parent=1 // pred_check
      _
    $region7: #{tpu_custom_call.1} parent=1 // pred_check_branch
      %24 = sbr.rel (0) target = $region9
    $region8: #{tpu_custom_call.1} parent=1 // pred_region
      %26 = vsyncadd [#allocation6], 0
      %s27 = sshll.u32 %s1, 4
      %s28 = int_to_ptr.hbm [resolvable:$true] %s27
      %s29 = sshll.u32 [#allocation5], 4
      %s30 = int_to_ptr.vmem [resolvable:$true] %s29
      %35 = dma.hbm_to_vmem [thread:$0]  %s28, 8320, %s30, [#allocation6], 128, 128, 8
    $region9: #{tpu_custom_call.1} parent=1 // pred_fallthru
      _
    // Predicated region
    $region10: #{tpu_custom_call.1} parent=1 // pred_check
      _
    $region11: #{tpu_custom_call.1} parent=1 // pred_check_branch
      %37 = sbr.rel (0) target = $region13
    $region12: #{tpu_custom_call.1} parent=1 // pred_region
      %39 = dma.done [#allocation3], 4864
    $region13: #{tpu_custom_call.1} parent=1 // pred_fallthru
      _
    // Predicated region
    $region14: #{tpu_custom_call.1} parent=1 // pred_check
      _
    $region15: #{tpu_custom_call.1} parent=1 // pred_check_branch
      %41 = sbr.rel (0) target = $region17
    $region16: #{tpu_custom_call.1} parent=1 // pred_region
      %43 = dma.done [#allocation6], 8320
    $region17: #{tpu_custom_call.1} parent=1 // pred_fallthru
      _
    %v44 = vld [vmem:[#allocation2] sm:$0xff]
    %v45 = vld [vmem:[#allocation2 + $0x8] sm:$0xff]
    %v46 = vld [vmem:[#allocation2 + $0x10] sm:$0xff]
    %v47 = vld [vmem:[#allocation2 + $0x18] sm:$0xff]
    %v48 = vld [vmem:[#allocation2 + $0x20] sm:$0xff]
    %v49 = vld [vmem:[#allocation2 + $0x28] sm:$0xff]
    %v50 = vld [vmem:[#allocation2 + $0x30] sm:$0xff]
    %v51 = vld [vmem:[#allocation2 + $0x38] sm:$0xff]
    %v52 = vld [vmem:[#allocation2 + $0x40] sm:$0xff]
    %v53 = vld [vmem:[#allocation2 + $0x48] sm:$0xff]
    %v54 = vld [vmem:[#allocation2 + $0x50] sm:$0xff]
    %v55 = vld [vmem:[#allocation2 + $0x58] sm:$0xff]
    %v56 = vld [vmem:[#allocation2 + $0x60] sm:$0xff]
    %v57 = vld [vmem:[#allocation2 + $0x68] sm:$0xff]
    %v58 = vld [vmem:[#allocation2 + $0x70] sm:$0xff]
    %v59 = vld [vmem:[#allocation2 + $0x78] sm:$0xff]
    %v60 = vld [vmem:[#allocation2 + $0x80] sm:$0xff]
    %v61 = vld [vmem:[#allocation2 + $0x88] sm:$0xff]
    %v62 = vld [vmem:[#allocation2 + $0x90] sm:$0xff]
    %v63 = vld [vmem:[#allocation2 + $0x98] sm:$0xff]
    %v64 = vld [vmem:[#allocation2 + $0xa0] sm:$0xff]
    %v65 = vld [vmem:[#allocation2 + $0xa8] sm:$0xff]
    %v66 = vld [vmem:[#allocation2 + $0xb0] sm:$0xff]
    %v67 = vld [vmem:[#allocation2 + $0xb8] sm:$0xff]
    %v68 = vld [vmem:[#allocation2 + $0xc0] sm:$0xff]
    %v69 = vld [vmem:[#allocation2 + $0xc8] sm:$0xff]
    %v70 = vld [vmem:[#allocation2 + $0xd0] sm:$0xff]
    %v71 = vld [vmem:[#allocation2 + $0xd8] sm:$0xff]
    %v72 = vld [vmem:[#allocation2 + $0xe0] sm:$0xff]
    %v73 = vld [vmem:[#allocation2 + $0xe8] sm:$0xff]
    %v74 = vld [vmem:[#allocation2 + $0xf0] sm:$0xff]
    %v75 = vld [vmem:[#allocation2 + $0xf8] sm:$0xff]
    %v76 = vld [vmem:[#allocation2 + $0x100] sm:$0xff]
    %v77 = vld [vmem:[#allocation2 + $0x108] sm:$0xff]
    %v78 = vld [vmem:[#allocation2 + $0x110] sm:$0xff]
    %v79 = vld [vmem:[#allocation2 + $0x118] sm:$0xff]
    %v80 = vld [vmem:[#allocation2 + $0x120] sm:$0xff]
    %v81 = vld [vmem:[#allocation2 + $0x128] sm:$0xff]
    %v82 = vld [vmem:[#allocation5] sm:$0xff]
    %v83 = vld [vmem:[#allocation5 + $0x8] sm:$0xff]
    %v84 = vld [vmem:[#allocation5 + $0x10] sm:$0xff]
    %v85 = vld [vmem:[#allocation5 + $0x18] sm:$0xff]
    %v86 = vld [vmem:[#allocation5 + $0x20] sm:$0xff]
    %v87 = vld [vmem:[#allocation5 + $0x28] sm:$0xff]
    %v88 = vld [vmem:[#allocation5 + $0x30] sm:$0xff]
    %v89 = vld [vmem:[#allocation5 + $0x38] sm:$0xff]
    %v90 = vld [vmem:[#allocation5 + $0x40] sm:$0xff]
    %v91 = vld [vmem:[#allocation5 + $0x48] sm:$0xff]
    %v92 = vld [vmem:[#allocation5 + $0x50] sm:$0xff]
    %v93 = vld [vmem:[#allocation5 + $0x58] sm:$0xff]
    %v94 = vld [vmem:[#allocation5 + $0x60] sm:$0xff]
    %v95 = vld [vmem:[#allocation5 + $0x68] sm:$0xff]
    %v96 = vld [vmem:[#allocation5 + $0x70] sm:$0xff]
    %v97 = vld [vmem:[#allocation5 + $0x78] sm:$0xff]
    %v98 = vld [vmem:[#allocation5 + $0x200] sm:$0x1]
    %v99 = vperm.slane %v98, 0
    %100 = vmatpush.msra.mxu0 %v97
    %101 = vmatpush.msra.mxu0 %v96
    %102 = vmatpush.msra.mxu0 %v95
    %103 = vmatpush.msra.mxu0 %v94
    %104 = vmatpush.msra.mxu0 %v93
    %105 = vmatpush.msra.mxu0 %v92
    %106 = vmatpush.msra.mxu0 %v91
    %107 = vmatpush.msra.mxu0 %v90
    %108 = vmatpush.msra.mxu0 %v89
    %109 = vmatpush.msra.mxu0 %v88
    %110 = vmatpush.msra.mxu0 %v87
    %111 = vmatpush.msra.mxu0 %v86
    %112 = vmatpush.msra.mxu0 %v85
    %113 = vmatpush.msra.mxu0 %v84
    %114 = vmatpush.msra.mxu0 %v83
    %115 = vmatpush.msra.mxu0 %v82
    %116 = vmatmul.f32.gmra.mxu0 %v44
    %v117 = vpop.f32.mrf.mxu0
    %v118 = vadd.f32 %v99, %v117
    %119 = vmatmul.f32.gmra.mxu0 %v45
    %v120 = vpop.f32.mrf.mxu0
    %v121 = vadd.f32 %v99, %v120
    %122 = vmatmul.f32.gmra.mxu0 %v46
    %v123 = vpop.f32.mrf.mxu0
    %v124 = vadd.f32 %v99, %v123
    %125 = vmatmul.f32.gmra.mxu0 %v47
    %v126 = vpop.f32.mrf.mxu0
    %v127 = vadd.f32 %v99, %v126
    %128 = vmatmul.f32.gmra.mxu0 %v48
    %v129 = vpop.f32.mrf.mxu0
    %v130 = vadd.f32 %v99, %v129
    %131 = vmatmul.f32.gmra.mxu0 %v49
    %v132 = vpop.f32.mrf.mxu0
    %v133 = vadd.f32 %v99, %v132
    %134 = vmatmul.f32.gmra.mxu0 %v50
    %v135 = vpop.f32.mrf.mxu0
    %v136 = vadd.f32 %v99, %v135
    %137 = vmatmul.f32.gmra.mxu0 %v51
    %v138 = vpop.f32.mrf.mxu0
    %v139 = vadd.f32 %v99, %v138
    %140 = vmatmul.f32.gmra.mxu0 %v52
    %v141 = vpop.f32.mrf.mxu0
    %v142 = vadd.f32 %v99, %v141
    %143 = vmatmul.f32.gmra.mxu0 %v53
    %v144 = vpop.f32.mrf.mxu0
    %v145 = vadd.f32 %v99, %v144
    %146 = vmatmul.f32.gmra.mxu0 %v54
    %v147 = vpop.f32.mrf.mxu0
    %v148 = vadd.f32 %v99, %v147
    %149 = vmatmul.f32.gmra.mxu0 %v55
    %v150 = vpop.f32.mrf.mxu0
    %v151 = vadd.f32 %v99, %v150
    %152 = vmatmul.f32.gmra.mxu0 %v56
    %v153 = vpop.f32.mrf.mxu0
    %v154 = vadd.f32 %v99, %v153
    %155 = vmatmul.f32.gmra.mxu0 %v57
    %v156 = vpop.f32.mrf.mxu0
    %v157 = vadd.f32 %v99, %v156
    %158 = vmatmul.f32.gmra.mxu0 %v58
    %v159 = vpop.f32.mrf.mxu0
    %v160 = vadd.f32 %v99, %v159
    %161 = vmatmul.f32.gmra.mxu0 %v59
    %v162 = vpop.f32.mrf.mxu0
    %v163 = vadd.f32 %v99, %v162
    %164 = vmatmul.f32.gmra.mxu0 %v60
    %v165 = vpop.f32.mrf.mxu0
    %v166 = vadd.f32 %v99, %v165
    %167 = vmatmul.f32.gmra.mxu0 %v61
    %v168 = vpop.f32.mrf.mxu0
    %v169 = vadd.f32 %v99, %v168
    %170 = vmatmul.f32.gmra.mxu0 %v62
    %v171 = vpop.f32.mrf.mxu0
    %v172 = vadd.f32 %v99, %v171
    %173 = vmatmul.f32.gmra.mxu0 %v63
    %v174 = vpop.f32.mrf.mxu0
    %v175 = vadd.f32 %v99, %v174
    %176 = vmatmul.f32.gmra.mxu0 %v64
    %v177 = vpop.f32.mrf.mxu0
    %v178 = vadd.f32 %v99, %v177
    %179 = vmatmul.f32.gmra.mxu0 %v65
    %v180 = vpop.f32.mrf.mxu0
    %v181 = vadd.f32 %v99, %v180
    %182 = vmatmul.f32.gmra.mxu0 %v66
    %v183 = vpop.f32.mrf.mxu0
    %v184 = vadd.f32 %v99, %v183
    %185 = vmatmul.f32.gmra.mxu0 %v67
    %v186 = vpop.f32.mrf.mxu0
    %v187 = vadd.f32 %v99, %v186
    %188 = vmatmul.f32.gmra.mxu0 %v68
    %v189 = vpop.f32.mrf.mxu0
    %v190 = vadd.f32 %v99, %v189
    %191 = vmatmul.f32.gmra.mxu0 %v69
    %v192 = vpop.f32.mrf.mxu0
    %v193 = vadd.f32 %v99, %v192
    %194 = vmatmul.f32.gmra.mxu0 %v70
    %v195 = vpop.f32.mrf.mxu0
    %v196 = vadd.f32 %v99, %v195
    %197 = vmatmul.f32.gmra.mxu0 %v71
    %v198 = vpop.f32.mrf.mxu0
    %v199 = vadd.f32 %v99, %v198
    %200 = vmatmul.f32.gmra.mxu0 %v72
    %v201 = vpop.f32.mrf.mxu0
    %v202 = vadd.f32 %v99, %v201
    %203 = vmatmul.f32.gmra.mxu0 %v73
    %v204 = vpop.f32.mrf.mxu0
    %v205 = vadd.f32 %v99, %v204
    %206 = vmatmul.f32.gmra.mxu0 %v74
    %v207 = vpop.f32.mrf.mxu0
    %v208 = vadd.f32 %v99, %v207
    %209 = vmatmul.f32.gmra.mxu0 %v75
    %v210 = vpop.f32.mrf.mxu0
    %v211 = vadd.f32 %v99, %v210
    %212 = vmatmul.f32.gmra.mxu0 %v76
    %v213 = vpop.f32.mrf.mxu0
    %v214 = vadd.f32 %v99, %v213
    %215 = vmatmul.f32.gmra.mxu0 %v77
    %v216 = vpop.f32.mrf.mxu0
    %v217 = vadd.f32 %v99, %v216
    %218 = vmatmul.f32.gmra.mxu0 %v78
    %v219 = vpop.f32.mrf.mxu0
    %v220 = vadd.f32 %v99, %v219
    %221 = vmatmul.f32.gmra.mxu0 %v79
    %v222 = vpop.f32.mrf.mxu0
    %v223 = vadd.f32 %v99, %v222
    %224 = vmatmul.f32.gmra.mxu0 %v80
    %v225 = vpop.f32.mrf.mxu0
    %v226 = vadd.f32 %v99, %v225
    %227 = vmatmul.f32.gmra.mxu0 %v81
    %v228 = vpop.f32.mrf.mxu0
    %v229 = vadd.f32 %v99, %v228
    %230 = vdwg.mxu0
    %v231 = vtanh.pop %v118
    %v232 = vtanh.pop %v121
    %v233 = vtanh.pop %v124
    %v234 = vtanh.pop %v127
    %v235 = vtanh.pop %v130
    %v236 = vtanh.pop %v133
    %v237 = vtanh.pop %v136
    %v238 = vtanh.pop %v139
    %v239 = vtanh.pop %v142
    %v240 = vtanh.pop %v145
    %v241 = vtanh.pop %v148
    %v242 = vtanh.pop %v151
    %v243 = vtanh.pop %v154
    %v244 = vtanh.pop %v157
    %v245 = vtanh.pop %v160
    %v246 = vtanh.pop %v163
    %v247 = vtanh.pop %v166
    %v248 = vtanh.pop %v169
    %v249 = vtanh.pop %v172
    %v250 = vtanh.pop %v175
    %v251 = vtanh.pop %v178
    %v252 = vtanh.pop %v181
    %v253 = vtanh.pop %v184
    %v254 = vtanh.pop %v187
    %v255 = vtanh.pop %v190
    %v256 = vtanh.pop %v193
    %v257 = vtanh.pop %v196
    %v258 = vtanh.pop %v199
    %v259 = vtanh.pop %v202
    %v260 = vtanh.pop %v205
    %v261 = vtanh.pop %v208
    %v262 = vtanh.pop %v211
    %v263 = vtanh.pop %v214
    %v264 = vtanh.pop %v217
    %v265 = vtanh.pop %v220
    %v266 = vtanh.pop %v223
    %v267 = vtanh.pop %v226
    %v268 = vtanh.pop %v229
    %v269 = vld [vmem:[#allocation5 + $0x80] sm:$0xff]
    %v270 = vld [vmem:[#allocation5 + $0x88] sm:$0xff]
    %v271 = vld [vmem:[#allocation5 + $0x90] sm:$0xff]
    %v272 = vld [vmem:[#allocation5 + $0x98] sm:$0xff]
    %v273 = vld [vmem:[#allocation5 + $0xa0] sm:$0xff]
    %v274 = vld [vmem:[#allocation5 + $0xa8] sm:$0xff]
    %v275 = vld [vmem:[#allocation5 + $0xb0] sm:$0xff]
    %v276 = vld [vmem:[#allocation5 + $0xb8] sm:$0xff]
    %v277 = vld [vmem:[#allocation5 + $0xc0] sm:$0xff]
    %v278 = vld [vmem:[#allocation5 + $0xc8] sm:$0xff]
    %v279 = vld [vmem:[#allocation5 + $0xd0] sm:$0xff]
    %v280 = vld [vmem:[#allocation5 + $0xd8] sm:$0xff]
    %v281 = vld [vmem:[#allocation5 + $0xe0] sm:$0xff]
    %v282 = vld [vmem:[#allocation5 + $0xe8] sm:$0xff]
    %v283 = vld [vmem:[#allocation5 + $0xf0] sm:$0xff]
    %v284 = vld [vmem:[#allocation5 + $0xf8] sm:$0xff]
    %v285 = vld [vmem:[#allocation5 + $0x201] sm:$0x1]
    %v286 = vperm.slane %v285, 0
    %287 = vmatpush.msra.mxu0 %v284
    %288 = vmatpush.msra.mxu0 %v283
    %289 = vmatpush.msra.mxu0 %v282
    %290 = vmatpush.msra.mxu0 %v281
    %291 = vmatpush.msra.mxu0 %v280
    %292 = vmatpush.msra.mxu0 %v279
    %293 = vmatpush.msra.mxu0 %v278
    %294 = vmatpush.msra.mxu0 %v277
    %295 = vmatpush.msra.mxu0 %v276
    %296 = vmatpush.msra.mxu0 %v275
    %297 = vmatpush.msra.mxu0 %v274
    %298 = vmatpush.msra.mxu0 %v273
    %299 = vmatpush.msra.mxu0 %v272
    %300 = vmatpush.msra.mxu0 %v271
    %301 = vmatpush.msra.mxu0 %v270
    %302 = vmatpush.msra.mxu0 %v269
    %303 = vmatmul.f32.gmra.mxu0 %v231
    %v304 = vpop.f32.mrf.mxu0
    %v305 = vadd.f32 %v286, %v304
    %306 = vmatmul.f32.gmra.mxu0 %v232
    %v307 = vpop.f32.mrf.mxu0
    %v308 = vadd.f32 %v286, %v307
    %309 = vmatmul.f32.gmra.mxu0 %v233
    %v310 = vpop.f32.mrf.mxu0
    %v311 = vadd.f32 %v286, %v310
    %312 = vmatmul.f32.gmra.mxu0 %v234
    %v313 = vpop.f32.mrf.mxu0
    %v314 = vadd.f32 %v286, %v313
    %315 = vmatmul.f32.gmra.mxu0 %v235
    %v316 = vpop.f32.mrf.mxu0
    %v317 = vadd.f32 %v286, %v316
    %318 = vmatmul.f32.gmra.mxu0 %v236
    %v319 = vpop.f32.mrf.mxu0
    %v320 = vadd.f32 %v286, %v319
    %321 = vmatmul.f32.gmra.mxu0 %v237
    %v322 = vpop.f32.mrf.mxu0
    %v323 = vadd.f32 %v286, %v322
    %324 = vmatmul.f32.gmra.mxu0 %v238
    %v325 = vpop.f32.mrf.mxu0
    %v326 = vadd.f32 %v286, %v325
    %327 = vmatmul.f32.gmra.mxu0 %v239
    %v328 = vpop.f32.mrf.mxu0
    %v329 = vadd.f32 %v286, %v328
    %330 = vmatmul.f32.gmra.mxu0 %v240
    %v331 = vpop.f32.mrf.mxu0
    %v332 = vadd.f32 %v286, %v331
    %333 = vmatmul.f32.gmra.mxu0 %v241
    %v334 = vpop.f32.mrf.mxu0
    %v335 = vadd.f32 %v286, %v334
    %336 = vmatmul.f32.gmra.mxu0 %v242
    %v337 = vpop.f32.mrf.mxu0
    %v338 = vadd.f32 %v286, %v337
    %339 = vmatmul.f32.gmra.mxu0 %v243
    %v340 = vpop.f32.mrf.mxu0
    %v341 = vadd.f32 %v286, %v340
    %342 = vmatmul.f32.gmra.mxu0 %v244
    %v343 = vpop.f32.mrf.mxu0
    %v344 = vadd.f32 %v286, %v343
    %345 = vmatmul.f32.gmra.mxu0 %v245
    %v346 = vpop.f32.mrf.mxu0
    %v347 = vadd.f32 %v286, %v346
    %348 = vmatmul.f32.gmra.mxu0 %v246
    %v349 = vpop.f32.mrf.mxu0
    %v350 = vadd.f32 %v286, %v349
    %351 = vmatmul.f32.gmra.mxu0 %v247
    %v352 = vpop.f32.mrf.mxu0
    %v353 = vadd.f32 %v286, %v352
    %354 = vmatmul.f32.gmra.mxu0 %v248
    %v355 = vpop.f32.mrf.mxu0
    %v356 = vadd.f32 %v286, %v355
    %357 = vmatmul.f32.gmra.mxu0 %v249
    %v358 = vpop.f32.mrf.mxu0
    %v359 = vadd.f32 %v286, %v358
    %360 = vmatmul.f32.gmra.mxu0 %v250
    %v361 = vpop.f32.mrf.mxu0
    %v362 = vadd.f32 %v286, %v361
    %363 = vmatmul.f32.gmra.mxu0 %v251
    %v364 = vpop.f32.mrf.mxu0
    %v365 = vadd.f32 %v286, %v364
    %366 = vmatmul.f32.gmra.mxu0 %v252
    %v367 = vpop.f32.mrf.mxu0
    %v368 = vadd.f32 %v286, %v367
    %369 = vmatmul.f32.gmra.mxu0 %v253
    %v370 = vpop.f32.mrf.mxu0
    %v371 = vadd.f32 %v286, %v370
    %372 = vmatmul.f32.gmra.mxu0 %v254
    %v373 = vpop.f32.mrf.mxu0
    %v374 = vadd.f32 %v286, %v373
    %375 = vmatmul.f32.gmra.mxu0 %v255
    %v376 = vpop.f32.mrf.mxu0
    %v377 = vadd.f32 %v286, %v376
    %378 = vmatmul.f32.gmra.mxu0 %v256
    %v379 = vpop.f32.mrf.mxu0
    %v380 = vadd.f32 %v286, %v379
    %381 = vmatmul.f32.gmra.mxu0 %v257
    %v382 = vpop.f32.mrf.mxu0
    %v383 = vadd.f32 %v286, %v382
    %384 = vmatmul.f32.gmra.mxu0 %v258
    %v385 = vpop.f32.mrf.mxu0
    %v386 = vadd.f32 %v286, %v385
    %387 = vmatmul.f32.gmra.mxu0 %v259
    %v388 = vpop.f32.mrf.mxu0
    %v389 = vadd.f32 %v286, %v388
    %390 = vmatmul.f32.gmra.mxu0 %v260
    %v391 = vpop.f32.mrf.mxu0
    %v392 = vadd.f32 %v286, %v391
    %393 = vmatmul.f32.gmra.mxu0 %v261
    %v394 = vpop.f32.mrf.mxu0
    %v395 = vadd.f32 %v286, %v394
    %396 = vmatmul.f32.gmra.mxu0 %v262
    %v397 = vpop.f32.mrf.mxu0
    %v398 = vadd.f32 %v286, %v397
    %399 = vmatmul.f32.gmra.mxu0 %v263
    %v400 = vpop.f32.mrf.mxu0
    %v401 = vadd.f32 %v286, %v400
    %402 = vmatmul.f32.gmra.mxu0 %v264
    %v403 = vpop.f32.mrf.mxu0
    %v404 = vadd.f32 %v286, %v403
    %405 = vmatmul.f32.gmra.mxu0 %v265
    %v406 = vpop.f32.mrf.mxu0
    %v407 = vadd.f32 %v286, %v406
    %408 = vmatmul.f32.gmra.mxu0 %v266
    %v409 = vpop.f32.mrf.mxu0
    %v410 = vadd.f32 %v286, %v409
    %411 = vmatmul.f32.gmra.mxu0 %v267
    %v412 = vpop.f32.mrf.mxu0
    %v413 = vadd.f32 %v286, %v412
    %414 = vmatmul.f32.gmra.mxu0 %v268
    %v415 = vpop.f32.mrf.mxu0
    %v416 = vadd.f32 %v286, %v415
    %417 = vdwg.mxu0
    %v418 = vlaneseq
    %v419 = vand.u32 %v418, 127
    %vm420 = vcmp.lt.s32.totalorder %v419, 16
    %v421 = vsel %vm420, %v44, 0.0
    %v422 = vsel %vm420, %v45, 0.0
    %v423 = vsel %vm420, %v46, 0.0
    %v424 = vsel %vm420, %v47, 0.0
    %v425 = vsel %vm420, %v48, 0.0
    %v426 = vsel %vm420, %v49, 0.0
    %v427 = vsel %vm420, %v50, 0.0
    %v428 = vsel %vm420, %v51, 0.0
    %v429 = vsel %vm420, %v52, 0.0
    %v430 = vsel %vm420, %v53, 0.0
    %v431 = vsel %vm420, %v54, 0.0
    %v432 = vsel %vm420, %v55, 0.0
    %v433 = vsel %vm420, %v56, 0.0
    %v434 = vsel %vm420, %v57, 0.0
    %v435 = vsel %vm420, %v58, 0.0
    %v436 = vsel %vm420, %v59, 0.0
    %v437 = vsel %vm420, %v60, 0.0
    %v438 = vsel %vm420, %v61, 0.0
    %v439 = vsel %vm420, %v62, 0.0
    %v440 = vsel %vm420, %v63, 0.0
    %v441 = vsel %vm420, %v64, 0.0
    %v442 = vsel %vm420, %v65, 0.0
    %v443 = vsel %vm420, %v66, 0.0
    %v444 = vsel %vm420, %v67, 0.0
    %v445 = vsel %vm420, %v68, 0.0
    %v446 = vsel %vm420, %v69, 0.0
    %v447 = vsel %vm420, %v70, 0.0
    %v448 = vsel %vm420, %v71, 0.0
    %v449 = vsel %vm420, %v72, 0.0
    %v450 = vsel %vm420, %v73, 0.0
    %v451 = vsel %vm420, %v74, 0.0
    %v452 = vsel %vm420, %v75, 0.0
    %v453 = vsel %vm420, %v76, 0.0
    %v454 = vsel %vm420, %v77, 0.0
    %v455 = vsel %vm420, %v78, 0.0
    %v456 = vsel %vm420, %v79, 0.0
    %v457 = vsel %vm420, %v80, 0.0
    %v458 = vsel %vm420, %v81, 0.0
    %v459 = vadd.f32 %v421, %v305
    %v460 = vadd.f32 %v422, %v308
    %v461 = vadd.f32 %v423, %v311
    %v462 = vadd.f32 %v424, %v314
    %v463 = vadd.f32 %v425, %v317
    %v464 = vadd.f32 %v426, %v320
    %v465 = vadd.f32 %v427, %v323
    %v466 = vadd.f32 %v428, %v326
    %v467 = vadd.f32 %v429, %v329
    %v468 = vadd.f32 %v430, %v332
    %v469 = vadd.f32 %v431, %v335
    %v470 = vadd.f32 %v432, %v338
    %v471 = vadd.f32 %v433, %v341
    %v472 = vadd.f32 %v434, %v344
    %v473 = vadd.f32 %v435, %v347
    %v474 = vadd.f32 %v436, %v350
    %v475 = vadd.f32 %v437, %v353
    %v476 = vadd.f32 %v438, %v356
    %v477 = vadd.f32 %v439, %v359
    %v478 = vadd.f32 %v440, %v362
    %v479 = vadd.f32 %v441, %v365
    %v480 = vadd.f32 %v442, %v368
    %v481 = vadd.f32 %v443, %v371
    %v482 = vadd.f32 %v444, %v374
    %v483 = vadd.f32 %v445, %v377
    %v484 = vadd.f32 %v446, %v380
    %v485 = vadd.f32 %v447, %v383
    %v486 = vadd.f32 %v448, %v386
    %v487 = vadd.f32 %v449, %v389
    %v488 = vadd.f32 %v450, %v392
    %v489 = vadd.f32 %v451, %v395
    %v490 = vadd.f32 %v452, %v398
    %v491 = vadd.f32 %v453, %v401
    %v492 = vadd.f32 %v454, %v404
    %v493 = vadd.f32 %v455, %v407
    %v494 = vadd.f32 %v456, %v410
    %v495 = vadd.f32 %v457, %v413
    %v496 = vadd.f32 %v458, %v416
    %v497 = vld [vmem:[#allocation5 + $0x100] sm:$0xff]
    %v498 = vld [vmem:[#allocation5 + $0x108] sm:$0xff]
    %v499 = vld [vmem:[#allocation5 + $0x110] sm:$0xff]
    %v500 = vld [vmem:[#allocation5 + $0x118] sm:$0xff]
    %v501 = vld [vmem:[#allocation5 + $0x120] sm:$0xff]
    %v502 = vld [vmem:[#allocation5 + $0x128] sm:$0xff]
    %v503 = vld [vmem:[#allocation5 + $0x130] sm:$0xff]
    %v504 = vld [vmem:[#allocation5 + $0x138] sm:$0xff]
    %v505 = vld [vmem:[#allocation5 + $0x140] sm:$0xff]
    %v506 = vld [vmem:[#allocation5 + $0x148] sm:$0xff]
    %v507 = vld [vmem:[#allocation5 + $0x150] sm:$0xff]
    %v508 = vld [vmem:[#allocation5 + $0x158] sm:$0xff]
    %v509 = vld [vmem:[#allocation5 + $0x160] sm:$0xff]
    %v510 = vld [vmem:[#allocation5 + $0x168] sm:$0xff]
    %v511 = vld [vmem:[#allocation5 + $0x170] sm:$0xff]
    %v512 = vld [vmem:[#allocation5 + $0x178] sm:$0xff]
    %v513 = vld [vmem:[#allocation5 + $0x202] sm:$0x1]
    %v514 = vperm.slane %v513, 0
    %515 = vmatpush.msra.mxu0 %v512
    %516 = vmatpush.msra.mxu0 %v511
    %517 = vmatpush.msra.mxu0 %v510
    %518 = vmatpush.msra.mxu0 %v509
    %519 = vmatpush.msra.mxu0 %v508
    %520 = vmatpush.msra.mxu0 %v507
    %521 = vmatpush.msra.mxu0 %v506
    %522 = vmatpush.msra.mxu0 %v505
    %523 = vmatpush.msra.mxu0 %v504
    %524 = vmatpush.msra.mxu0 %v503
    %525 = vmatpush.msra.mxu0 %v502
    %526 = vmatpush.msra.mxu0 %v501
    %527 = vmatpush.msra.mxu0 %v500
    %528 = vmatpush.msra.mxu0 %v499
    %529 = vmatpush.msra.mxu0 %v498
    %530 = vmatpush.msra.mxu0 %v497
    %531 = vmatmul.f32.gmra.mxu0 %v459
    %v532 = vpop.f32.mrf.mxu0
    %v533 = vadd.f32 %v514, %v532
    %534 = vmatmul.f32.gmra.mxu0 %v460
    %v535 = vpop.f32.mrf.mxu0
    %v536 = vadd.f32 %v514, %v535
    %537 = vmatmul.f32.gmra.mxu0 %v461
    %v538 = vpop.f32.mrf.mxu0
    %v539 = vadd.f32 %v514, %v538
    %540 = vmatmul.f32.gmra.mxu0 %v462
    %v541 = vpop.f32.mrf.mxu0
    %v542 = vadd.f32 %v514, %v541
    %543 = vmatmul.f32.gmra.mxu0 %v463
    %v544 = vpop.f32.mrf.mxu0
    %v545 = vadd.f32 %v514, %v544
    %546 = vmatmul.f32.gmra.mxu0 %v464
    %v547 = vpop.f32.mrf.mxu0
    %v548 = vadd.f32 %v514, %v547
    %549 = vmatmul.f32.gmra.mxu0 %v465
    %v550 = vpop.f32.mrf.mxu0
    %v551 = vadd.f32 %v514, %v550
    %552 = vmatmul.f32.gmra.mxu0 %v466
    %v553 = vpop.f32.mrf.mxu0
    %v554 = vadd.f32 %v514, %v553
    %555 = vmatmul.f32.gmra.mxu0 %v467
    %v556 = vpop.f32.mrf.mxu0
    %v557 = vadd.f32 %v514, %v556
    %558 = vmatmul.f32.gmra.mxu0 %v468
    %v559 = vpop.f32.mrf.mxu0
    %v560 = vadd.f32 %v514, %v559
    %561 = vmatmul.f32.gmra.mxu0 %v469
    %v562 = vpop.f32.mrf.mxu0
    %v563 = vadd.f32 %v514, %v562
    %564 = vmatmul.f32.gmra.mxu0 %v470
    %v565 = vpop.f32.mrf.mxu0
    %v566 = vadd.f32 %v514, %v565
    %567 = vmatmul.f32.gmra.mxu0 %v471
    %v568 = vpop.f32.mrf.mxu0
    %v569 = vadd.f32 %v514, %v568
    %570 = vmatmul.f32.gmra.mxu0 %v472
    %v571 = vpop.f32.mrf.mxu0
    %v572 = vadd.f32 %v514, %v571
    %573 = vmatmul.f32.gmra.mxu0 %v473
    %v574 = vpop.f32.mrf.mxu0
    %v575 = vadd.f32 %v514, %v574
    %576 = vmatmul.f32.gmra.mxu0 %v474
    %v577 = vpop.f32.mrf.mxu0
    %v578 = vadd.f32 %v514, %v577
    %579 = vmatmul.f32.gmra.mxu0 %v475
    %v580 = vpop.f32.mrf.mxu0
    %v581 = vadd.f32 %v514, %v580
    %582 = vmatmul.f32.gmra.mxu0 %v476
    %v583 = vpop.f32.mrf.mxu0
    %v584 = vadd.f32 %v514, %v583
    %585 = vmatmul.f32.gmra.mxu0 %v477
    %v586 = vpop.f32.mrf.mxu0
    %v587 = vadd.f32 %v514, %v586
    %588 = vmatmul.f32.gmra.mxu0 %v478
    %v589 = vpop.f32.mrf.mxu0
    %v590 = vadd.f32 %v514, %v589
    %591 = vmatmul.f32.gmra.mxu0 %v479
    %v592 = vpop.f32.mrf.mxu0
    %v593 = vadd.f32 %v514, %v592
    %594 = vmatmul.f32.gmra.mxu0 %v480
    %v595 = vpop.f32.mrf.mxu0
    %v596 = vadd.f32 %v514, %v595
    %597 = vmatmul.f32.gmra.mxu0 %v481
    %v598 = vpop.f32.mrf.mxu0
    %v599 = vadd.f32 %v514, %v598
    %600 = vmatmul.f32.gmra.mxu0 %v482
    %v601 = vpop.f32.mrf.mxu0
    %v602 = vadd.f32 %v514, %v601
    %603 = vmatmul.f32.gmra.mxu0 %v483
    %v604 = vpop.f32.mrf.mxu0
    %v605 = vadd.f32 %v514, %v604
    %606 = vmatmul.f32.gmra.mxu0 %v484
    %v607 = vpop.f32.mrf.mxu0
    %v608 = vadd.f32 %v514, %v607
    %609 = vmatmul.f32.gmra.mxu0 %v485
    %v610 = vpop.f32.mrf.mxu0
    %v611 = vadd.f32 %v514, %v610
    %612 = vmatmul.f32.gmra.mxu0 %v486
    %v613 = vpop.f32.mrf.mxu0
    %v614 = vadd.f32 %v514, %v613
    %615 = vmatmul.f32.gmra.mxu0 %v487
    %v616 = vpop.f32.mrf.mxu0
    %v617 = vadd.f32 %v514, %v616
    %618 = vmatmul.f32.gmra.mxu0 %v488
    %v619 = vpop.f32.mrf.mxu0
    %v620 = vadd.f32 %v514, %v619
    %621 = vmatmul.f32.gmra.mxu0 %v489
    %v622 = vpop.f32.mrf.mxu0
    %v623 = vadd.f32 %v514, %v622
    %624 = vmatmul.f32.gmra.mxu0 %v490
    %v625 = vpop.f32.mrf.mxu0
    %v626 = vadd.f32 %v514, %v625
    %627 = vmatmul.f32.gmra.mxu0 %v491
    %v628 = vpop.f32.mrf.mxu0
    %v629 = vadd.f32 %v514, %v628
    %630 = vmatmul.f32.gmra.mxu0 %v492
    %v631 = vpop.f32.mrf.mxu0
    %v632 = vadd.f32 %v514, %v631
    %633 = vmatmul.f32.gmra.mxu0 %v493
    %v634 = vpop.f32.mrf.mxu0
    %v635 = vadd.f32 %v514, %v634
    %636 = vmatmul.f32.gmra.mxu0 %v494
    %v637 = vpop.f32.mrf.mxu0
    %v638 = vadd.f32 %v514, %v637
    %639 = vmatmul.f32.gmra.mxu0 %v495
    %v640 = vpop.f32.mrf.mxu0
    %v641 = vadd.f32 %v514, %v640
    %642 = vmatmul.f32.gmra.mxu0 %v496
    %v643 = vpop.f32.mrf.mxu0
    %v644 = vadd.f32 %v514, %v643
    %645 = vdwg.mxu0
    %v646 = vtanh.pop %v533
    %v647 = vtanh.pop %v536
    %v648 = vtanh.pop %v539
    %v649 = vtanh.pop %v542
    %v650 = vtanh.pop %v545
    %v651 = vtanh.pop %v548
    %v652 = vtanh.pop %v551
    %v653 = vtanh.pop %v554
    %v654 = vtanh.pop %v557
    %v655 = vtanh.pop %v560
    %v656 = vtanh.pop %v563
    %v657 = vtanh.pop %v566
    %v658 = vtanh.pop %v569
    %v659 = vtanh.pop %v572
    %v660 = vtanh.pop %v575
    %v661 = vtanh.pop %v578
    %v662 = vtanh.pop %v581
    %v663 = vtanh.pop %v584
    %v664 = vtanh.pop %v587
    %v665 = vtanh.pop %v590
    %v666 = vtanh.pop %v593
    %v667 = vtanh.pop %v596
    %v668 = vtanh.pop %v599
    %v669 = vtanh.pop %v602
    %v670 = vtanh.pop %v605
    %v671 = vtanh.pop %v608
    %v672 = vtanh.pop %v611
    %v673 = vtanh.pop %v614
    %v674 = vtanh.pop %v617
    %v675 = vtanh.pop %v620
    %v676 = vtanh.pop %v623
    %v677 = vtanh.pop %v626
    %v678 = vtanh.pop %v629
    %v679 = vtanh.pop %v632
    %v680 = vtanh.pop %v635
    %v681 = vtanh.pop %v638
    %v682 = vtanh.pop %v641
    %v683 = vtanh.pop %v644
    %v684 = vld [vmem:[#allocation5 + $0x180] sm:$0xff]
    %v685 = vld [vmem:[#allocation5 + $0x188] sm:$0xff]
    %v686 = vld [vmem:[#allocation5 + $0x190] sm:$0xff]
    %v687 = vld [vmem:[#allocation5 + $0x198] sm:$0xff]
    %v688 = vld [vmem:[#allocation5 + $0x1a0] sm:$0xff]
    %v689 = vld [vmem:[#allocation5 + $0x1a8] sm:$0xff]
    %v690 = vld [vmem:[#allocation5 + $0x1b0] sm:$0xff]
    %v691 = vld [vmem:[#allocation5 + $0x1b8] sm:$0xff]
    %v692 = vld [vmem:[#allocation5 + $0x1c0] sm:$0xff]
    %v693 = vld [vmem:[#allocation5 + $0x1c8] sm:$0xff]
    %v694 = vld [vmem:[#allocation5 + $0x1d0] sm:$0xff]
    %v695 = vld [vmem:[#allocation5 + $0x1d8] sm:$0xff]
    %v696 = vld [vmem:[#allocation5 + $0x1e0] sm:$0xff]
    %v697 = vld [vmem:[#allocation5 + $0x1e8] sm:$0xff]
    %v698 = vld [vmem:[#allocation5 + $0x1f0] sm:$0xff]
    %v699 = vld [vmem:[#allocation5 + $0x1f8] sm:$0xff]
    %v700 = vld [vmem:[#allocation5 + $0x203] sm:$0x1]
    %v701 = vperm.slane %v700, 0
    %702 = vmatpush.msra.mxu0 %v699
    %703 = vmatpush.msra.mxu0 %v698
    %704 = vmatpush.msra.mxu0 %v697
    %705 = vmatpush.msra.mxu0 %v696
    %706 = vmatpush.msra.mxu0 %v695
    %707 = vmatpush.msra.mxu0 %v694
    %708 = vmatpush.msra.mxu0 %v693
    %709 = vmatpush.msra.mxu0 %v692
    %710 = vmatpush.msra.mxu0 %v691
    %711 = vmatpush.msra.mxu0 %v690
    %712 = vmatpush.msra.mxu0 %v689
    %713 = vmatpush.msra.mxu0 %v688
    %714 = vmatpush.msra.mxu0 %v687
    %715 = vmatpush.msra.mxu0 %v686
    %716 = vmatpush.msra.mxu0 %v685
    %717 = vmatpush.msra.mxu0 %v684
    %718 = vmatmul.f32.gmra.mxu0 %v646
    %v719 = vpop.f32.mrf.mxu0
    %v720 = vadd.f32 %v701, %v719
    %721 = vmatmul.f32.gmra.mxu0 %v647
    %v722 = vpop.f32.mrf.mxu0
    %v723 = vadd.f32 %v701, %v722
    %724 = vmatmul.f32.gmra.mxu0 %v648
    %v725 = vpop.f32.mrf.mxu0
    %v726 = vadd.f32 %v701, %v725
    %727 = vmatmul.f32.gmra.mxu0 %v649
    %v728 = vpop.f32.mrf.mxu0
    %v729 = vadd.f32 %v701, %v728
    %730 = vmatmul.f32.gmra.mxu0 %v650
    %v731 = vpop.f32.mrf.mxu0
    %v732 = vadd.f32 %v701, %v731
    %733 = vmatmul.f32.gmra.mxu0 %v651
    %v734 = vpop.f32.mrf.mxu0
    %v735 = vadd.f32 %v701, %v734
    %736 = vmatmul.f32.gmra.mxu0 %v652
    %v737 = vpop.f32.mrf.mxu0
    %v738 = vadd.f32 %v701, %v737
    %739 = vmatmul.f32.gmra.mxu0 %v653
    %v740 = vpop.f32.mrf.mxu0
    %v741 = vadd.f32 %v701, %v740
    %742 = vmatmul.f32.gmra.mxu0 %v654
    %v743 = vpop.f32.mrf.mxu0
    %v744 = vadd.f32 %v701, %v743
    %745 = vmatmul.f32.gmra.mxu0 %v655
    %v746 = vpop.f32.mrf.mxu0
    %v747 = vadd.f32 %v701, %v746
    %748 = vmatmul.f32.gmra.mxu0 %v656
    %v749 = vpop.f32.mrf.mxu0
    %v750 = vadd.f32 %v701, %v749
    %751 = vmatmul.f32.gmra.mxu0 %v657
    %v752 = vpop.f32.mrf.mxu0
    %v753 = vadd.f32 %v701, %v752
    %754 = vmatmul.f32.gmra.mxu0 %v658
    %v755 = vpop.f32.mrf.mxu0
    %v756 = vadd.f32 %v701, %v755
    %757 = vmatmul.f32.gmra.mxu0 %v659
    %v758 = vpop.f32.mrf.mxu0
    %v759 = vadd.f32 %v701, %v758
    %760 = vmatmul.f32.gmra.mxu0 %v660
    %v761 = vpop.f32.mrf.mxu0
    %v762 = vadd.f32 %v701, %v761
    %763 = vmatmul.f32.gmra.mxu0 %v661
    %v764 = vpop.f32.mrf.mxu0
    %v765 = vadd.f32 %v701, %v764
    %766 = vmatmul.f32.gmra.mxu0 %v662
    %v767 = vpop.f32.mrf.mxu0
    %v768 = vadd.f32 %v701, %v767
    %769 = vmatmul.f32.gmra.mxu0 %v663
    %v770 = vpop.f32.mrf.mxu0
    %v771 = vadd.f32 %v701, %v770
    %772 = vmatmul.f32.gmra.mxu0 %v664
    %v773 = vpop.f32.mrf.mxu0
    %v774 = vadd.f32 %v701, %v773
    %775 = vmatmul.f32.gmra.mxu0 %v665
    %v776 = vpop.f32.mrf.mxu0
    %v777 = vadd.f32 %v701, %v776
    %778 = vmatmul.f32.gmra.mxu0 %v666
    %v779 = vpop.f32.mrf.mxu0
    %v780 = vadd.f32 %v701, %v779
    %781 = vmatmul.f32.gmra.mxu0 %v667
    %v782 = vpop.f32.mrf.mxu0
    %v783 = vadd.f32 %v701, %v782
    %784 = vmatmul.f32.gmra.mxu0 %v668
    %v785 = vpop.f32.mrf.mxu0
    %v786 = vadd.f32 %v701, %v785
    %787 = vmatmul.f32.gmra.mxu0 %v669
    %v788 = vpop.f32.mrf.mxu0
    %v789 = vadd.f32 %v701, %v788
    %790 = vmatmul.f32.gmra.mxu0 %v670
    %v791 = vpop.f32.mrf.mxu0
    %v792 = vadd.f32 %v701, %v791
    %793 = vmatmul.f32.gmra.mxu0 %v671
    %v794 = vpop.f32.mrf.mxu0
    %v795 = vadd.f32 %v701, %v794
    %796 = vmatmul.f32.gmra.mxu0 %v672
    %v797 = vpop.f32.mrf.mxu0
    %v798 = vadd.f32 %v701, %v797
    %799 = vmatmul.f32.gmra.mxu0 %v673
    %v800 = vpop.f32.mrf.mxu0
    %v801 = vadd.f32 %v701, %v800
    %802 = vmatmul.f32.gmra.mxu0 %v674
    %v803 = vpop.f32.mrf.mxu0
    %v804 = vadd.f32 %v701, %v803
    %805 = vmatmul.f32.gmra.mxu0 %v675
    %v806 = vpop.f32.mrf.mxu0
    %v807 = vadd.f32 %v701, %v806
    %808 = vmatmul.f32.gmra.mxu0 %v676
    %v809 = vpop.f32.mrf.mxu0
    %v810 = vadd.f32 %v701, %v809
    %811 = vmatmul.f32.gmra.mxu0 %v677
    %v812 = vpop.f32.mrf.mxu0
    %v813 = vadd.f32 %v701, %v812
    %814 = vmatmul.f32.gmra.mxu0 %v678
    %v815 = vpop.f32.mrf.mxu0
    %v816 = vadd.f32 %v701, %v815
    %817 = vmatmul.f32.gmra.mxu0 %v679
    %v818 = vpop.f32.mrf.mxu0
    %v819 = vadd.f32 %v701, %v818
    %820 = vmatmul.f32.gmra.mxu0 %v680
    %v821 = vpop.f32.mrf.mxu0
    %v822 = vadd.f32 %v701, %v821
    %823 = vmatmul.f32.gmra.mxu0 %v681
    %v824 = vpop.f32.mrf.mxu0
    %v825 = vadd.f32 %v701, %v824
    %826 = vmatmul.f32.gmra.mxu0 %v682
    %v827 = vpop.f32.mrf.mxu0
    %v828 = vadd.f32 %v701, %v827
    %829 = vmatmul.f32.gmra.mxu0 %v683
    %v830 = vpop.f32.mrf.mxu0
    %v831 = vadd.f32 %v701, %v830
    %832 = vdwg.mxu0
    %833 = vst [vmem:[#allocation7] sm:$0xff] %v720
    %834 = vst [vmem:[#allocation7 + $0x8] sm:$0xff] %v723
    %835 = vst [vmem:[#allocation7 + $0x10] sm:$0xff] %v726
    %836 = vst [vmem:[#allocation7 + $0x18] sm:$0xff] %v729
    %837 = vst [vmem:[#allocation7 + $0x20] sm:$0xff] %v732
    %838 = vst [vmem:[#allocation7 + $0x28] sm:$0xff] %v735
    %839 = vst [vmem:[#allocation7 + $0x30] sm:$0xff] %v738
    %840 = vst [vmem:[#allocation7 + $0x38] sm:$0xff] %v741
    %841 = vst [vmem:[#allocation7 + $0x40] sm:$0xff] %v744
    %842 = vst [vmem:[#allocation7 + $0x48] sm:$0xff] %v747
    %843 = vst [vmem:[#allocation7 + $0x50] sm:$0xff] %v750
    %844 = vst [vmem:[#allocation7 + $0x58] sm:$0xff] %v753
    %845 = vst [vmem:[#allocation7 + $0x60] sm:$0xff] %v756
    %846 = vst [vmem:[#allocation7 + $0x68] sm:$0xff] %v759
    %847 = vst [vmem:[#allocation7 + $0x70] sm:$0xff] %v762
    %848 = vst [vmem:[#allocation7 + $0x78] sm:$0xff] %v765
    %849 = vst [vmem:[#allocation7 + $0x80] sm:$0xff] %v768
    %850 = vst [vmem:[#allocation7 + $0x88] sm:$0xff] %v771
    %851 = vst [vmem:[#allocation7 + $0x90] sm:$0xff] %v774
    %852 = vst [vmem:[#allocation7 + $0x98] sm:$0xff] %v777
    %853 = vst [vmem:[#allocation7 + $0xa0] sm:$0xff] %v780
    %854 = vst [vmem:[#allocation7 + $0xa8] sm:$0xff] %v783
    %855 = vst [vmem:[#allocation7 + $0xb0] sm:$0xff] %v786
    %856 = vst [vmem:[#allocation7 + $0xb8] sm:$0xff] %v789
    %857 = vst [vmem:[#allocation7 + $0xc0] sm:$0xff] %v792
    %858 = vst [vmem:[#allocation7 + $0xc8] sm:$0xff] %v795
    %859 = vst [vmem:[#allocation7 + $0xd0] sm:$0xff] %v798
    %860 = vst [vmem:[#allocation7 + $0xd8] sm:$0xff] %v801
    %861 = vst [vmem:[#allocation7 + $0xe0] sm:$0xff] %v804
    %862 = vst [vmem:[#allocation7 + $0xe8] sm:$0xff] %v807
    %863 = vst [vmem:[#allocation7 + $0xf0] sm:$0xff] %v810
    %864 = vst [vmem:[#allocation7 + $0xf8] sm:$0xff] %v813
    %865 = vst [vmem:[#allocation7 + $0x100] sm:$0xff] %v816
    %866 = vst [vmem:[#allocation7 + $0x108] sm:$0xff] %v819
    %867 = vst [vmem:[#allocation7 + $0x110] sm:$0xff] %v822
    %868 = vst [vmem:[#allocation7 + $0x118] sm:$0xff] %v825
    %869 = vst [vmem:[#allocation7 + $0x120] sm:$0xff] %v828
    %870 = vst [vmem:[#allocation7 + $0x128] sm:$0xff] %v831
    // Predicated region
    $region18: #{tpu_custom_call.1} parent=1 // pred_check
      _
    $region19: #{tpu_custom_call.1} parent=1 // pred_check_branch
      %872 = sbr.rel (0) target = $region21
    $region20: #{tpu_custom_call.1} parent=1 // pred_region
      %874 = vsyncadd [#allocation4], 0
      %s875 = sshll.u32 [#allocation7], 4
      %s876 = int_to_ptr.vmem [resolvable:$true] %s875
      %s877 = sshll.u32 %s2, 4
      %s878 = int_to_ptr.hbm [resolvable:$true] %s877
      %883 = dma.vmem_to_hbm [thread:$0]  %s876, 4864, %s878, [#allocation4], 128, 128, 8
    $region21: #{tpu_custom_call.1} parent=1 // pred_fallthru
      _
    // Predicated region
    $region22: #{tpu_custom_call.1} parent=1 // pred_check
      _
    $region23: #{tpu_custom_call.1} parent=1 // pred_check_branch
      %885 = sbr.rel (0) target = $region25
    $region24: #{tpu_custom_call.1} parent=1 // pred_region
      %887 = dma.done [#allocation4], 4864
    $region25: #{tpu_custom_call.1} parent=1 // pred_fallthru
      _
    %888 = vsyncpa [#allocation3], 1
    %889 = vsyncpa [#allocation6], 1
    %890 = vsyncpa [#allocation4], 1

</llo_original>
